<compile_context>
chip_gen: v7x
topology: tpu7x:2x2x1
jax: 0.10.0
libtpu: 0.0.40
codegen_flags: <defaults>
</compile_context>

<pallas_src>
import functools

import jax
import jax.numpy as jnp
from jax.experimental import pallas as pl
from jax.experimental.pallas import tpu as pltpu


# ----------------------------- shared in-kernel helpers -----------------------------

def _fold_bn_dropout(sum_h, sumsq_h, gamma, beta, *, batch_size, eps, inv_keep):
    """Fold BatchNorm (batch mean / unbiased var) + dropout rescale into scale/shift."""
    mean = sum_h * (1.0 / batch_size)
    denom = 1.0 / max(batch_size - 1, 1)            # torch.var default: unbiased; guard B==1
    var = (sumsq_h - batch_size * mean * mean) * denom
    inv_std = jax.lax.rsqrt(var + eps)              # EUP op on a (1, H) row only
    g = gamma * inv_std
    scale = g * inv_keep
    shift = (beta - mean * g) * inv_keep
    return scale, shift


def _classify_head(hd, w2, b2, y, pred_ref):
    """Second Linear + argmax + per-tile CE / correct-count sums (padded class dim)."""
    logits = jnp.dot(hd.astype(w2.dtype), w2,
                     preferred_element_type=jnp.float32) + b2
    cp = logits.shape[1]                            # lane-dense padded class dim (>=128)
    col = jax.lax.broadcasted_iota(jnp.int32, logits.shape, 1)
    mx = jnp.max(logits, axis=1, keepdims=True)
    # first max index, like torch.argmax; padded columns carry -1e30 bias -> never win
    pred = jnp.min(jnp.where(logits >= mx, col, cp), axis=1, keepdims=True)
    pred_ref[...] = pred
    lse = jnp.log(jnp.sum(jnp.exp(logits - mx), axis=1, keepdims=True)) + mx
    picked = jnp.sum(jnp.where(col == y, logits, 0.0), axis=1, keepdims=True)
    loss_sum = jnp.sum(lse - picked, axis=0, keepdims=True)
    correct_sum = jnp.sum((pred == y).astype(jnp.float32), axis=0, keepdims=True)
    return loss_sum, correct_sum


# ----------------------------- single-tile fused kernel -----------------------------

def _mlp_single_tile_kernel(x_ref, w1_ref, b1_ref, gamma_ref, beta_ref, w2_ref,
                            b2_ref, y_ref, *rest, batch_size, keep_prob,
                            drop_threshold, eps):
    if keep_prob < 1.0:
        rbits_ref, pred_ref, loss_ref, acc_ref = rest
    else:
        rbits_ref = None
        pred_ref, loss_ref, acc_ref = rest

    inv_b = 1.0 / batch_size
    # drop_rate == 1.0 would divide by zero (torch produces NaNs there too).
    inv_keep = (1.0 / keep_prob) if keep_prob > 0.0 else float("inf")

    # Linear 1 on the MXU (bf16 inputs, f32 accumulation) — computed exactly once.
    h = jnp.dot(x_ref[...], w1_ref[...],
                preferred_element_type=jnp.float32) + b1_ref[...]

    scale, shift = _fold_bn_dropout(
        jnp.sum(h, axis=0, keepdims=True),
        jnp.sum(h * h, axis=0, keepdims=True),
        gamma_ref[...], beta_ref[...],
        batch_size=batch_size, eps=eps, inv_keep=inv_keep)

    hr = jnp.maximum(h * scale + shift, 0.0)
    if keep_prob < 1.0:
        # Bernoulli(keep_prob) via integer threshold compare + fused select; the
        # 1/keep_prob rescale is already folded into scale/shift (ReLU commutes).
        hd = jnp.where(rbits_ref[...] < drop_threshold, hr, 0.0)
    else:
        hd = hr

    loss_sum, correct_sum = _classify_head(hd, w2_ref[...], b2_ref[...],
                                           y_ref[...], pred_ref)
    loss_ref[...] = loss_sum * inv_b
    acc_ref[...] = correct_sum * inv_b


# ----------------------------- two-phase tiled kernel --------------------------------

def _mlp_two_phase_kernel(x_ref, w1_ref, b1_ref, gamma_ref, beta_ref, w2_ref, b2_ref,
                          y_ref, *rest, batch_size, keep_prob, drop_threshold, eps):
    if keep_prob < 1.0:
        (rbits_ref, pred_ref, loss_ref, acc_ref,
         sum_ref, sumsq_ref, scale_ref, shift_ref) = rest
    else:
        rbits_ref = None
        (pred_ref, loss_ref, acc_ref,
         sum_ref, sumsq_ref, scale_ref, shift_ref) = rest

    phase = pl.program_id(0)          # 0: batch statistics, 1: normalize + classify
    i = pl.program_id(1)              # batch tile index
    nb = pl.num_programs(1)

    inv_b = 1.0 / batch_size
    inv_keep = (1.0 / keep_prob) if keep_prob > 0.0 else float("inf")

    @pl.when(jnp.logical_and(phase == 0, i == 0))
    def _init():
        sum_ref[...] = jnp.zeros_like(sum_ref)
        sumsq_ref[...] = jnp.zeros_like(sumsq_ref)
        loss_ref[...] = jnp.zeros_like(loss_ref)
        acc_ref[...] = jnp.zeros_like(acc_ref)

    # Linear 1 on the MXU; recomputed in each phase (cheaper than spilling h to HBM).
    h = jnp.dot(x_ref[...], w1_ref[...],
                preferred_element_type=jnp.float32) + b1_ref[...]

    @pl.when(phase == 0)
    def _stats():
        sum_ref[...] += jnp.sum(h, axis=0, keepdims=True)
        sumsq_ref[...] += jnp.sum(h * h, axis=0, keepdims=True)

    @pl.when(jnp.logical_and(phase == 0, i == nb - 1))
    def _finalize_stats():
        scale, shift = _fold_bn_dropout(
            sum_ref[...], sumsq_ref[...], gamma_ref[...], beta_ref[...],
            batch_size=batch_size, eps=eps, inv_keep=inv_keep)
        scale_ref[...] = scale
        shift_ref[...] = shift

    @pl.when(phase == 1)
    def _classify():
        hr = jnp.maximum(h * scale_ref[...] + shift_ref[...], 0.0)
        if keep_prob < 1.0:
            hd = jnp.where(rbits_ref[...] < drop_threshold, hr, 0.0)
        else:
            hd = hr
        loss_sum, correct_sum = _classify_head(hd, w2_ref[...], b2_ref[...],
                                               y_ref[...], pred_ref)
        loss_ref[...] += loss_sum * inv_b
        acc_ref[...] += correct_sum * inv_b


# ----------------------------------- wrapper -----------------------------------------

_SINGLE_TILE_MAX = 512


def _pick_batch_tile(batch):
    if batch <= _SINGLE_TILE_MAX:
        return batch
    for t in (256, 128, 64, 32, 16, 8):
        if batch % t == 0:
            return t
    return batch  # ragged large batch: single-tile fallback (see TODO at top)


def init_params(key, in_num, hidden_num, out_num):
    k1, k2, k3, k4, k5 = jax.random.split(key, 5)
    lim1 = 1.0 / jnp.sqrt(jnp.float32(in_num))
    w1 = jax.random.uniform(k1, (in_num, hidden_num), jnp.float32, -lim1, lim1)
    b1 = jax.random.uniform(k2, (1, hidden_num), jnp.float32, -lim1, lim1)
    gamma = jax.random.normal(k3, (1, hidden_num), jnp.float32)   # BatchNorm1d weight ~ randn
    beta = jnp.zeros((1, hidden_num), jnp.float32)                # BatchNorm1d bias  = zeros
    lim2 = 1.0 / jnp.sqrt(jnp.float32(hidden_num))
    w2 = jax.random.uniform(k4, (hidden_num, out_num), jnp.float32, -lim2, lim2)
    b2 = jax.random.uniform(k5, (1, out_num), jnp.float32, -lim2, lim2)
    return (w1, b1, gamma, beta, w2, b2)


def model_forward(x, y=None, *, params, drop_rate=0.5, eps=1e-8, seed=0,
                  matmul_dtype=jnp.bfloat16):
    w1, b1, gamma, beta, w2, b2 = params
    B, IN = x.shape
    H = w1.shape[1]
    C = w2.shape[1]
    CP = max(128, ((C + 127) // 128) * 128)          # lane-dense padded class dim
    keep_prob = 1.0 - float(drop_rate)

    # Pad W2 / b2 to CP columns; padded bias = -1e30 so argmax / softmax / CE unaffected.
    w2p = jnp.zeros((H, CP), jnp.float32).at[:, :C].set(w2.astype(jnp.float32))
    b2p = jnp.full((1, CP), -1e30, jnp.float32).at[:, :C].set(
        b2.reshape(1, C).astype(jnp.float32))

    # bf16 MXU inputs (f32 accumulation) — halves x / weight VMEM & DMA bytes.
    xq = x.astype(matmul_dtype)
    w1q = w1.astype(matmul_dtype)
    w2q = w2p.astype(matmul_dtype)
    b1r = b1.reshape(1, H).astype(jnp.float32)
    gr = gamma.reshape(1, H).astype(jnp.float32)
    br = beta.reshape(1, H).astype(jnp.float32)

    y_arr = (jnp.zeros((B, 1), jnp.int32) if y is None
             else y.reshape(B, 1).astype(jnp.int32))

    drop_threshold = 0
    rbits = None
    if keep_prob < 1.0:
        # 31-bit uniform integers compared against keep_prob * 2^31 inside the kernel.
        rbits = (jax.random.bits(jax.random.PRNGKey(seed), shape=(B, H),
                                 dtype=jnp.uint32) >> 1).astype(jnp.int32)
        drop_threshold = min(int(keep_prob * 2147483648.0), 2147483647)

    tb = _pick_batch_tile(B)
    nb = B // tb
    out_shape = (
        jax.ShapeDtypeStruct((B, 1), jnp.int32),     # pred
        jax.ShapeDtypeStruct((1, 1), jnp.float32),   # loss
        jax.ShapeDtypeStruct((1, 1), jnp.float32),   # acc
    )

    if nb == 1:
        # ---------------- fast path: whole batch in one VMEM tile -----------------
        kernel = functools.partial(
            _mlp_single_tile_kernel, batch_size=B, keep_prob=keep_prob,
            drop_threshold=drop_threshold, eps=eps)
        const = lambda i: (0, 0)
        in_specs = [
            pl.BlockSpec((B, IN), const),
            pl.BlockSpec((IN, H), const),
            pl.BlockSpec((1, H), const),
            pl.BlockSpec((1, H), const),
            pl.BlockSpec((1, H), const),
            pl.BlockSpec((H, CP), const),
            pl.BlockSpec((1, CP), const),
            pl.BlockSpec((B, 1), const),
        ]
        inputs = [xq, w1q, b1r, gr, br, w2q, b2p, y_arr]
        if keep_prob < 1.0:
            inputs.append(rbits)
            in_specs.append(pl.BlockSpec((B, H), const))

        pred, loss, acc = pl.pallas_call(
            kernel,
            grid=(1,),
            in_specs=in_specs,
            out_specs=(
                pl.BlockSpec((B, 1), const),
                pl.BlockSpec((1, 1), const),
                pl.BlockSpec((1, 1), const),
            ),
            out_shape=out_shape,
            compiler_params=pltpu.CompilerParams(
                dimension_semantics=("arbitrary",)),
        )(*inputs)
    else:
        # ---------------- large-batch path: two-phase tiled grid ------------------
        kernel = functools.partial(
            _mlp_two_phase_kernel, batch_size=B, keep_prob=keep_prob,
            drop_threshold=drop_threshold, eps=eps)
        grid = (2, nb)                                # (phase, batch tile)
        const = lambda p, i: (0, 0)                   # weights / per-feature rows
        tiled = lambda p, i: (i, 0)                   # batch-tiled, both phases
        phase1 = lambda p, i: (p * i, 0)              # only consumed in phase 1

        in_specs = [
            pl.BlockSpec((tb, IN), tiled),
            pl.BlockSpec((IN, H), const),
            pl.BlockSpec((1, H), const),
            pl.BlockSpec((1, H), const),
            pl.BlockSpec((1, H), const),
            pl.BlockSpec((H, CP), const),
            pl.BlockSpec((1, CP), const),
            pl.BlockSpec((tb, 1), phase1),
        ]
        inputs = [xq, w1q, b1r, gr, br, w2q, b2p, y_arr]
        if keep_prob < 1.0:
            inputs.append(rbits)
            in_specs.append(pl.BlockSpec((tb, H), phase1))

        pred, loss, acc = pl.pallas_call(
            kernel,
            grid=grid,
            in_specs=in_specs,
            out_specs=(
                pl.BlockSpec((tb, 1), tiled),         # pred
                pl.BlockSpec((1, 1), const),          # loss (VMEM-resident accumulator)
                pl.BlockSpec((1, 1), const),          # acc  (VMEM-resident accumulator)
            ),
            out_shape=out_shape,
            scratch_shapes=[
                pltpu.VMEM((1, H), jnp.float32),      # sum
                pltpu.VMEM((1, H), jnp.float32),      # sumsq
                pltpu.VMEM((1, H), jnp.float32),      # scale
                pltpu.VMEM((1, H), jnp.float32),      # shift
            ],
            compiler_params=pltpu.CompilerParams(
                dimension_semantics=("arbitrary", "arbitrary")),
        )(*inputs)

    if y is None:
        return pred[:, 0]
    return loss[0, 0], acc[0, 0]


if __name__ == "__main__":
    # Small shapes consistent with Model(drop_rate, in_num, out_num, hidden_num)
    B, IN, HID, OUT = 8, 256, 128, 10

    key = jax.random.PRNGKey(0)
    kx, ky, kp = jax.random.split(key, 3)
    x = jax.random.normal(kx, (B, IN), jnp.float32)
    y = jax.random.randint(ky, (B,), 0, OUT, jnp.int32)
    params = init_params(kp, IN, HID, OUT)

    # forward(x, y) -> (loss, acc)
    loss, acc = model_forward(x, y, params=params, drop_rate=0.5, eps=1e-8, seed=0)
    jax.block_until_ready((loss, acc))

    # forward(x) -> pred
    pred = model_forward(x, None, params=params, drop_rate=0.5, eps=1e-8, seed=0)
    jax.block_until_ready(pred)

    assert pred.shape == (B,)
    assert loss.shape == () and acc.shape == ()
    print("KERNEL_OK")
</pallas_src>

<mosaic_0001>
module attributes {stable_mosaic.version = 11 : i64} {
  func.func @_mlp_single_tile_kernel(%arg0: i32, %arg1: memref<8x256xbf16, #tpu.memory_space<vmem>>, %arg2: memref<256x128xbf16, #tpu.memory_space<vmem>>, %arg3: memref<1x128xf32, #tpu.memory_space<vmem>>, %arg4: memref<1x128xf32, #tpu.memory_space<vmem>>, %arg5: memref<1x128xf32, #tpu.memory_space<vmem>>, %arg6: memref<128x128xbf16, #tpu.memory_space<vmem>>, %arg7: memref<1x128xf32, #tpu.memory_space<vmem>>, %arg8: memref<8x1xi32, #tpu.memory_space<vmem>>, %arg9: memref<8x128xi32, #tpu.memory_space<vmem>>, %arg10: memref<8x1xi32, #tpu.memory_space<vmem>>, %arg11: memref<1x1xf32, #tpu.memory_space<vmem>>, %arg12: memref<1x1xf32, #tpu.memory_space<vmem>>) attributes {dimension_semantics = [#tpu.dimension_semantics<arbitrary>], iteration_bounds = array<i64: 1>, scalar_prefetch = 0 : i64, scratch_operands = 0 : i64, tpu.core_type = #tpu.core_type<tc>, window_params = [{pipeline_mode = #tpu.pipeline_mode<synchronous>, transform_indices = @transform_0, window_bounds = array<i64: 8, 256>}, {pipeline_mode = #tpu.pipeline_mode<synchronous>, transform_indices = @transform_1, window_bounds = array<i64: 256, 128>}, {pipeline_mode = #tpu.pipeline_mode<synchronous>, transform_indices = @transform_2, window_bounds = array<i64: 1, 128>}, {pipeline_mode = #tpu.pipeline_mode<synchronous>, transform_indices = @transform_3, window_bounds = array<i64: 1, 128>}, {pipeline_mode = #tpu.pipeline_mode<synchronous>, transform_indices = @transform_4, window_bounds = array<i64: 1, 128>}, {pipeline_mode = #tpu.pipeline_mode<synchronous>, transform_indices = @transform_5, window_bounds = array<i64: 128, 128>}, {pipeline_mode = #tpu.pipeline_mode<synchronous>, transform_indices = @transform_6, window_bounds = array<i64: 1, 128>}, {pipeline_mode = #tpu.pipeline_mode<synchronous>, transform_indices = @transform_7, window_bounds = array<i64: 8, 1>}, {pipeline_mode = #tpu.pipeline_mode<synchronous>, transform_indices = @transform_8, window_bounds = array<i64: 8, 128>}, {pipeline_mode = #tpu.pipeline_mode<synchronous>, transform_indices = @transform_9, window_bounds = array<i64: 8, 1>}, {pipeline_mode = #tpu.pipeline_mode<synchronous>, transform_indices = @transform_10, window_bounds = array<i64: 1, 1>}, {pipeline_mode = #tpu.pipeline_mode<synchronous>, transform_indices = @transform_11, window_bounds = array<i64: 1, 1>}]} {
    %c0 = arith.constant 0 : index
    %c0_0 = arith.constant 0 : index
    %0 = vector.load %arg1[%c0, %c0_0] : memref<8x256xbf16, #tpu.memory_space<vmem>>, vector<8x256xbf16>
    %c0_1 = arith.constant 0 : index
    %c0_2 = arith.constant 0 : index
    %1 = vector.load %arg2[%c0_1, %c0_2] : memref<256x128xbf16, #tpu.memory_space<vmem>>, vector<256x128xbf16>
    %cst = arith.constant dense<0.000000e+00> : vector<8x128xf32>
    %2 = tpu.matmul %0, %1, %cst {dimension_numbers = #tpu.dot_dimension_numbers<[1], [0], [0], [1], [0, 0, 1, 1], [], []>} : vector<8x256xbf16>, vector<256x128xbf16>, vector<8x128xf32> -> vector<8x128xf32>
    %c0_3 = arith.constant 0 : index
    %c0_4 = arith.constant 0 : index
    %3 = vector.load %arg3[%c0_3, %c0_4] : memref<1x128xf32, #tpu.memory_space<vmem>>, vector<1x128xf32>
    %4 = vector.broadcast %3 : vector<1x128xf32> to vector<8x128xf32>
    %5 = arith.addf %2, %4 : vector<8x128xf32>
    %cst_5 = arith.constant dense<0.000000e+00> : vector<128xf32>
    %6 = vector.multi_reduction <add>, %5, %cst_5 [0] : vector<8x128xf32> to vector<128xf32>
    %7 = vector.shape_cast %6 : vector<128xf32> to vector<1x128xf32>
    %8 = arith.mulf %5, %5 : vector<8x128xf32>
    %cst_6 = arith.constant dense<0.000000e+00> : vector<128xf32>
    %9 = vector.multi_reduction <add>, %8, %cst_6 [0] : vector<8x128xf32> to vector<128xf32>
    %10 = vector.shape_cast %9 : vector<128xf32> to vector<1x128xf32>
    %c0_7 = arith.constant 0 : index
    %c0_8 = arith.constant 0 : index
    %11 = vector.load %arg4[%c0_7, %c0_8] : memref<1x128xf32, #tpu.memory_space<vmem>>, vector<1x128xf32>
    %c0_9 = arith.constant 0 : index
    %c0_10 = arith.constant 0 : index
    %12 = vector.load %arg5[%c0_9, %c0_10] : memref<1x128xf32, #tpu.memory_space<vmem>>, vector<1x128xf32>
    %cst_11 = arith.constant 1.250000e-01 : f32
    %13 = vector.broadcast %cst_11 : f32 to vector<1x128xf32>
    %14 = arith.mulf %7, %13 : vector<1x128xf32>
    %cst_12 = arith.constant 8.000000e+00 : f32
    %15 = vector.broadcast %cst_12 : f32 to vector<1x128xf32>
    %16 = arith.mulf %15, %14 : vector<1x128xf32>
    %17 = arith.mulf %16, %14 : vector<1x128xf32>
    %18 = arith.subf %10, %17 : vector<1x128xf32>
    %cst_13 = arith.constant 0.142857149 : f32
    %19 = vector.broadcast %cst_13 : f32 to vector<1x128xf32>
    %20 = arith.mulf %18, %19 : vector<1x128xf32>
    %cst_14 = arith.constant 9.99999993E-9 : f32
    %21 = vector.broadcast %cst_14 : f32 to vector<1x128xf32>
    %22 = arith.addf %20, %21 : vector<1x128xf32>
    %23 = math.rsqrt %22 : vector<1x128xf32>
    %24 = arith.mulf %11, %23 : vector<1x128xf32>
    %cst_15 = arith.constant 2.000000e+00 : f32
    %25 = vector.broadcast %cst_15 : f32 to vector<1x128xf32>
    %26 = arith.mulf %24, %25 : vector<1x128xf32>
    %27 = arith.mulf %14, %24 : vector<1x128xf32>
    %28 = arith.subf %12, %27 : vector<1x128xf32>
    %cst_16 = arith.constant 2.000000e+00 : f32
    %29 = vector.broadcast %cst_16 : f32 to vector<1x128xf32>
    %30 = arith.mulf %28, %29 : vector<1x128xf32>
    %31 = vector.broadcast %26 : vector<1x128xf32> to vector<8x128xf32>
    %32 = arith.mulf %5, %31 : vector<8x128xf32>
    %33 = vector.broadcast %30 : vector<1x128xf32> to vector<8x128xf32>
    %34 = arith.addf %32, %33 : vector<8x128xf32>
    %cst_17 = arith.constant 0.000000e+00 : f32
    %35 = vector.broadcast %cst_17 : f32 to vector<8x128xf32>
    %36 = arith.maximumf %34, %35 : vector<8x128xf32>
    %c0_18 = arith.constant 0 : index
    %c0_19 = arith.constant 0 : index
    %37 = vector.load %arg9[%c0_18, %c0_19] : memref<8x128xi32, #tpu.memory_space<vmem>>, vector<8x128xi32>
    %c1073741824_i32 = arith.constant 1073741824 : i32
    %38 = vector.broadcast %c1073741824_i32 : i32 to vector<8x128xi32>
    %39 = arith.cmpi slt, %37, %38 : vector<8x128xi32>
    %cst_20 = arith.constant 0.000000e+00 : f32
    %40 = vector.broadcast %cst_20 : f32 to vector<8x128xf32>
    %41 = arith.select %39, %36, %40 : vector<8x128xi1>, vector<8x128xf32>
    %c0_21 = arith.constant 0 : index
    %c0_22 = arith.constant 0 : index
    %42 = vector.load %arg6[%c0_21, %c0_22] : memref<128x128xbf16, #tpu.memory_space<vmem>>, vector<128x128xbf16>
    %c0_23 = arith.constant 0 : index
    %c0_24 = arith.constant 0 : index
    %43 = vector.load %arg7[%c0_23, %c0_24] : memref<1x128xf32, #tpu.memory_space<vmem>>, vector<1x128xf32>
    %c0_25 = arith.constant 0 : index
    %c0_26 = arith.constant 0 : index
    %44 = vector.load %arg8[%c0_25, %c0_26] : memref<8x1xi32, #tpu.memory_space<vmem>>, vector<8x1xi32>
    %45 = arith.truncf %41 : vector<8x128xf32> to vector<8x128xbf16>
    %cst_27 = arith.constant dense<0.000000e+00> : vector<8x128xf32>
    %46 = tpu.matmul %45, %42, %cst_27 {dimension_numbers = #tpu.dot_dimension_numbers<[1], [0], [0], [1], [0, 0, 1, 1], [], []>} : vector<8x128xbf16>, vector<128x128xbf16>, vector<8x128xf32> -> vector<8x128xf32>
    %47 = vector.broadcast %43 : vector<1x128xf32> to vector<8x128xf32>
    %48 = arith.addf %46, %47 : vector<8x128xf32>
    %49 = tpu.iota {dimensions = array<i32: 1>} : vector<8x128xi32>
    %cst_28 = arith.constant dense<0xFF800000> : vector<8xf32>
    %50 = vector.multi_reduction <maximumf>, %48, %cst_28 [1] : vector<8x128xf32> to vector<8xf32>
    %51 = vector.shape_cast %50 : vector<8xf32> to vector<8x1xf32>
    %52 = vector.broadcast %51 : vector<8x1xf32> to vector<8x128xf32>
    %53 = arith.cmpf oge, %48, %52 : vector<8x128xf32>
    %c128_i32 = arith.constant 128 : i32
    %54 = vector.broadcast %c128_i32 : i32 to vector<8x128xi32>
    %55 = arith.select %53, %49, %54 : vector<8x128xi1>, vector<8x128xi32>
    %cst_29 = arith.constant dense<2147483647> : vector<8xi32>
    %56 = vector.multi_reduction <minsi>, %55, %cst_29 [1] : vector<8x128xi32> to vector<8xi32>
    %57 = vector.shape_cast %56 : vector<8xi32> to vector<8x1xi32>
    %c0_30 = arith.constant 0 : index
    %c0_31 = arith.constant 0 : index
    %58 = vector.load %arg10[%c0_30, %c0_31] : memref<8x1xi32, #tpu.memory_space<vmem>>, vector<8x1xi32>
    tpu.vector_store %arg10[%c0_30, %c0_31], %57 {strides = array<i32>} : memref<8x1xi32, #tpu.memory_space<vmem>>, vector<8x1xi32>,
    %59 = vector.broadcast %51 : vector<8x1xf32> to vector<8x128xf32>
    %60 = arith.subf %48, %59 : vector<8x128xf32>
    %61 = math.exp %60 : vector<8x128xf32>
    %cst_32 = arith.constant dense<0.000000e+00> : vector<8xf32>
    %62 = vector.multi_reduction <add>, %61, %cst_32 [1] : vector<8x128xf32> to vector<8xf32>
    %63 = vector.shape_cast %62 : vector<8xf32> to vector<8x1xf32>
    %64 = math.log %63 : vector<8x1xf32>
    %65 = arith.addf %64, %51 : vector<8x1xf32>
    %66 = vector.broadcast %44 : vector<8x1xi32> to vector<8x128xi32>
    %67 = arith.cmpi eq, %49, %66 : vector<8x128xi32>
    %cst_33 = arith.constant 0.000000e+00 : f32
    %68 = vector.broadcast %cst_33 : f32 to vector<8x128xf32>
    %69 = arith.select %67, %48, %68 : vector<8x128xi1>, vector<8x128xf32>
    %cst_34 = arith.constant dense<0.000000e+00> : vector<8xf32>
    %70 = vector.multi_reduction <add>, %69, %cst_34 [1] : vector<8x128xf32> to vector<8xf32>
    %71 = vector.shape_cast %70 : vector<8xf32> to vector<8x1xf32>
    %72 = arith.subf %65, %71 : vector<8x1xf32>
    %cst_35 = arith.constant dense<0.000000e+00> : vector<1xf32>
    %73 = vector.multi_reduction <add>, %72, %cst_35 [0] : vector<8x1xf32> to vector<1xf32>
    %74 = vector.shape_cast %73 : vector<1xf32> to vector<1x1xf32>
    %75 = arith.cmpi eq, %57, %44 : vector<8x1xi32>
    %76 = arith.extui %75 : vector<8x1xi1> to vector<8x1xi32>
    %77 = arith.sitofp %76 : vector<8x1xi32> to vector<8x1xf32>
    %cst_36 = arith.constant dense<0.000000e+00> : vector<1xf32>
    %78 = vector.multi_reduction <add>, %77, %cst_36 [0] : vector<8x1xf32> to vector<1xf32>
    %79 = vector.shape_cast %78 : vector<1xf32> to vector<1x1xf32>
    %cst_37 = arith.constant 1.250000e-01 : f32
    %80 = vector.broadcast %cst_37 : f32 to vector<1x1xf32>
    %81 = arith.mulf %74, %80 : vector<1x1xf32>
    %c0_38 = arith.constant 0 : index
    %c0_39 = arith.constant 0 : index
    %82 = vector.load %arg11[%c0_38, %c0_39] : memref<1x1xf32, #tpu.memory_space<vmem>>, vector<1x1xf32>
    tpu.vector_store %arg11[%c0_38, %c0_39], %81 {strides = array<i32>} : memref<1x1xf32, #tpu.memory_space<vmem>>, vector<1x1xf32>,
    %cst_40 = arith.constant 1.250000e-01 : f32
    %83 = vector.broadcast %cst_40 : f32 to vector<1x1xf32>
    %84 = arith.mulf %79, %83 : vector<1x1xf32>
    %c0_41 = arith.constant 0 : index
    %c0_42 = arith.constant 0 : index
    %85 = vector.load %arg12[%c0_41, %c0_42] : memref<1x1xf32, #tpu.memory_space<vmem>>, vector<1x1xf32>
    tpu.vector_store %arg12[%c0_41, %c0_42], %84 {strides = array<i32>} : memref<1x1xf32, #tpu.memory_space<vmem>>, vector<1x1xf32>,
    return
  }
  func.func @transform_0(%arg0: i32) -> (i32, i32) {
    %c0_i32 = arith.constant 0 : i32
    %c0_i32_0 = arith.constant 0 : i32
    %c0_i32_1 = arith.constant 0 : i32
    return %c0_i32, %c0_i32_0 : i32, i32
  }
  func.func @transform_1(%arg0: i32) -> (i32, i32) {
    %c0_i32 = arith.constant 0 : i32
    %c0_i32_0 = arith.constant 0 : i32
    %c0_i32_1 = arith.constant 0 : i32
    return %c0_i32, %c0_i32_0 : i32, i32
  }
  func.func @transform_2(%arg0: i32) -> (i32, i32) {
    %c0_i32 = arith.constant 0 : i32
    %c0_i32_0 = arith.constant 0 : i32
    %c0_i32_1 = arith.constant 0 : i32
    return %c0_i32, %c0_i32_0 : i32, i32
  }
  func.func @transform_3(%arg0: i32) -> (i32, i32) {
    %c0_i32 = arith.constant 0 : i32
    %c0_i32_0 = arith.constant 0 : i32
    %c0_i32_1 = arith.constant 0 : i32
    return %c0_i32, %c0_i32_0 : i32, i32
  }
  func.func @transform_4(%arg0: i32) -> (i32, i32) {
    %c0_i32 = arith.constant 0 : i32
    %c0_i32_0 = arith.constant 0 : i32
    %c0_i32_1 = arith.constant 0 : i32
    return %c0_i32, %c0_i32_0 : i32, i32
  }
  func.func @transform_5(%arg0: i32) -> (i32, i32) {
    %c0_i32 = arith.constant 0 : i32
    %c0_i32_0 = arith.constant 0 : i32
    %c0_i32_1 = arith.constant 0 : i32
    return %c0_i32, %c0_i32_0 : i32, i32
  }
  func.func @transform_6(%arg0: i32) -> (i32, i32) {
    %c0_i32 = arith.constant 0 : i32
    %c0_i32_0 = arith.constant 0 : i32
    %c0_i32_1 = arith.constant 0 : i32
    return %c0_i32, %c0_i32_0 : i32, i32
  }
  func.func @transform_7(%arg0: i32) -> (i32, i32) {
    %c0_i32 = arith.constant 0 : i32
    %c0_i32_0 = arith.constant 0 : i32
    %c0_i32_1 = arith.constant 0 : i32
    return %c0_i32, %c0_i32_0 : i32, i32
  }
  func.func @transform_8(%arg0: i32) -> (i32, i32) {
    %c0_i32 = arith.constant 0 : i32
    %c0_i32_0 = arith.constant 0 : i32
    %c0_i32_1 = arith.constant 0 : i32
    return %c0_i32, %c0_i32_0 : i32, i32
  }
  func.func @transform_9(%arg0: i32) -> (i32, i32) {
    %c0_i32 = arith.constant 0 : i32
    %c0_i32_0 = arith.constant 0 : i32
    %c0_i32_1 = arith.constant 0 : i32
    return %c0_i32, %c0_i32_0 : i32, i32
  }
  func.func @transform_10(%arg0: i32) -> (i32, i32) {
    %c0_i32 = arith.constant 0 : i32
    %c0_i32_0 = arith.constant 0 : i32
    %c0_i32_1 = arith.constant 0 : i32
    return %c0_i32, %c0_i32_0 : i32, i32
  }
  func.func @transform_11(%arg0: i32) -> (i32, i32) {
    %c0_i32 = arith.constant 0 : i32
    %c0_i32_0 = arith.constant 0 : i32
    %c0_i32_1 = arith.constant 0 : i32
    return %c0_i32, %c0_i32_0 : i32, i32
  }
}

</mosaic_0001>

<llo_original>
// kernel: tpu_custom_call.1
$region0: #{tpu_custom_call.1}
  #allocation0 [shape = 'u32[]', space=smem, size = 0x4, offset = 0x4, fixed_abs, tag = 'smem constant byte address 0x4 - core index']
  #allocation1 [shape = 'u32[144,128]{1,0:T(1,128)}', space=vmem, size = 0x12000, scoped, tag = 'internal scratch']
  %s0 = inlined_call_operand.vmem [shape: bf16[8,256], index: 0, kind: input, shape index: {}]
  %s1 = inlined_call_operand.hbm [shape: bf16[256,128], index: 1, kind: input, shape index: {}]
  %s2 = inlined_call_operand.hbm [shape: f32[1,128], index: 2, kind: input, shape index: {}]
  %s3 = inlined_call_operand.vmem [shape: f32[1,128], index: 3, kind: input, shape index: {}]
  %s4 = inlined_call_operand.vmem [shape: f32[1,128], index: 4, kind: input, shape index: {}]
  %s5 = inlined_call_operand.hbm [shape: bf16[128,128], index: 5, kind: input, shape index: {}]
  %s6 = inlined_call_operand.vmem [shape: f32[1,128], index: 6, kind: input, shape index: {}]
  %s7 = inlined_call_operand.vmem [shape: s32[8,1], index: 7, kind: input, shape index: {}]
  %s8 = inlined_call_operand.vmem [shape: s32[8,128], index: 8, kind: input, shape index: {}]
  %s9 = inlined_call_operand.vmem [shape: s32[8,1], index: 9, kind: output, shape index: {0}]
  %s10 = inlined_call_operand.hbm [shape: f32[1,1], index: 10, kind: output, shape index: {1}]
  %s11 = inlined_call_operand.hbm [shape: f32[1,1], index: 11, kind: output, shape index: {2}]
  %12 = xla_tuple %s9, %s10, %s11
  %s13 = sld [smem:[#allocation0]]
  $region74: #{tpu_custom_call.1} parent=0
    _
  %s15 = ssub.s32 1, %s13
  %s16 = scalar_select 0, %s15, %s13
  $region1: #{tpu_custom_call.1} parent=0
    #allocation2 [shape = 'u8[65536]{0}', space=vmem, size = 0x10000, scoped, tag = 'input window, operand 1, single buffered']
    #allocation3 [shape = 's32[1]{0}', space=sflag, size = 0x4, scoped, tag = 'scoped memory for tpu_custom_call.1']
    #allocation4 [shape = 's32[1]{0}', space=sflag, size = 0x4, scoped, tag = 'scoped memory for tpu_custom_call.1']
    #allocation5 [shape = 'u8[512]{0}', space=vmem, size = 0x400, scoped, tag = 'input window, operand 2, single buffered']
    #allocation6 [shape = 's32[1]{0}', space=sflag, size = 0x4, scoped, tag = 'scoped memory for tpu_custom_call.1']
    #allocation7 [shape = 'u8[32768]{0}', space=vmem, size = 0x8000, scoped, tag = 'input window, operand 5, single buffered']
    #allocation8 [shape = 'u8[512]{0}', space=vmem, size = 0x400, scoped, tag = 'output window, operand 1, single buffered']
    #allocation9 [shape = 'u8[512]{0}', space=vmem, size = 0x400, scoped, tag = 'output window, operand 2, single buffered']
    #allocation10 [shape = 's32[1]{0}', space=sflag, size = 0x4, scoped, tag = 'scoped memory for tpu_custom_call.1']
    %17 = vsyncpa [#allocation3], 0
    %18 = vsyncpa [#allocation6], 0
    %19 = vsyncpa [#allocation4], 0
    %20 = vsyncpa [#allocation10], 0
    // Predicated region
    $region2: #{tpu_custom_call.1} parent=1 // pred_check
      _
    $region3: #{tpu_custom_call.1} parent=1 // pred_check_branch
      %22 = sbr.rel (0) target = $region5
    $region4: #{tpu_custom_call.1} parent=1 // pred_region
      _
    $region5: #{tpu_custom_call.1} parent=1 // pred_fallthru
      _
    // Predicated region
    $region6: #{tpu_custom_call.1} parent=1 // pred_check
      _
    $region7: #{tpu_custom_call.1} parent=1 // pred_check_branch
      %24 = sbr.rel (0) target = $region9
    $region8: #{tpu_custom_call.1} parent=1 // pred_region
      %s26 = ssub.s32 2048, 2048
      %27 = vsyncadd [#allocation3], %s26
      %s28 = sshll.u32 [#allocation2], 4
      %s29 = int_to_ptr.vmem [resolvable:$true] %s28
      %34 = dma.hbm_to_vmem [thread:$0]  %s1, 2048, %s29, [#allocation3], 64, 64, 4
    $region9: #{tpu_custom_call.1} parent=1 // pred_fallthru
      _
    // Predicated region
    $region10: #{tpu_custom_call.1} parent=1 // pred_check
      _
    $region11: #{tpu_custom_call.1} parent=1 // pred_check_branch
      %36 = sbr.rel (0) target = $region13
    $region12: #{tpu_custom_call.1} parent=1 // pred_region
      %s38 = ssub.s32 16, 16
      %39 = vsyncadd [#allocation6], %s38
      %s41 = sshll.u32 [#allocation5], 4
      %s42 = int_to_ptr.vmem [resolvable:$true] %s41
      %44 = dma.hbm_to_vmem [thread:$0]  %s2, 16, %s42, [#allocation6]
    $region13: #{tpu_custom_call.1} parent=1 // pred_fallthru
      _
    // Predicated region
    $region14: #{tpu_custom_call.1} parent=1 // pred_check
      _
    $region15: #{tpu_custom_call.1} parent=1 // pred_check_branch
      %46 = sbr.rel (0) target = $region17
    $region16: #{tpu_custom_call.1} parent=1 // pred_region
      _
    $region17: #{tpu_custom_call.1} parent=1 // pred_fallthru
      _
    // Predicated region
    $region18: #{tpu_custom_call.1} parent=1 // pred_check
      _
    $region19: #{tpu_custom_call.1} parent=1 // pred_check_branch
      %48 = sbr.rel (0) target = $region21
    $region20: #{tpu_custom_call.1} parent=1 // pred_region
      _
    $region21: #{tpu_custom_call.1} parent=1 // pred_fallthru
      _
    // Predicated region
    $region22: #{tpu_custom_call.1} parent=1 // pred_check
      _
    $region23: #{tpu_custom_call.1} parent=1 // pred_check_branch
      %50 = sbr.rel (0) target = $region25
    $region24: #{tpu_custom_call.1} parent=1 // pred_region
      %s52 = ssub.s32 1024, 1024
      %53 = vsyncadd [#allocation6], %s52
      %s54 = sshll.u32 [#allocation7], 4
      %s55 = int_to_ptr.vmem [resolvable:$true] %s54
      %60 = dma.hbm_to_vmem [thread:$0]  %s5, 1024, %s55, [#allocation6], 64, 64, 4
    $region25: #{tpu_custom_call.1} parent=1 // pred_fallthru
      _
    // Predicated region
    $region26: #{tpu_custom_call.1} parent=1 // pred_check
      _
    $region27: #{tpu_custom_call.1} parent=1 // pred_check_branch
      %62 = sbr.rel (0) target = $region29
    $region28: #{tpu_custom_call.1} parent=1 // pred_region
      _
    $region29: #{tpu_custom_call.1} parent=1 // pred_fallthru
      _
    // Predicated region
    $region30: #{tpu_custom_call.1} parent=1 // pred_check
      _
    $region31: #{tpu_custom_call.1} parent=1 // pred_check_branch
      %64 = sbr.rel (0) target = $region33
    $region32: #{tpu_custom_call.1} parent=1 // pred_region
      _
    $region33: #{tpu_custom_call.1} parent=1 // pred_fallthru
      _
    // Predicated region
    $region34: #{tpu_custom_call.1} parent=1 // pred_check
      _
    $region35: #{tpu_custom_call.1} parent=1 // pred_check_branch
      %66 = sbr.rel (0) target = $region37
    $region36: #{tpu_custom_call.1} parent=1 // pred_region
      _
    $region37: #{tpu_custom_call.1} parent=1 // pred_fallthru
      _
    // Predicated region
    $region38: #{tpu_custom_call.1} parent=1 // pred_check
      _
    $region39: #{tpu_custom_call.1} parent=1 // pred_check_branch
      %68 = sbr.rel (0) target = $region41
    $region40: #{tpu_custom_call.1} parent=1 // pred_region
      %69 = dma.done [#allocation3], 2048
    $region41: #{tpu_custom_call.1} parent=1 // pred_fallthru
      _
    // Predicated region
    $region42: #{tpu_custom_call.1} parent=1 // pred_check
      _
    $region43: #{tpu_custom_call.1} parent=1 // pred_check_branch
      %71 = sbr.rel (0) target = $region45
    $region44: #{tpu_custom_call.1} parent=1 // pred_region
      %72 = dma.done [#allocation6], 16
    $region45: #{tpu_custom_call.1} parent=1 // pred_fallthru
      _
    // Predicated region
    $region46: #{tpu_custom_call.1} parent=1 // pred_check
      _
    $region47: #{tpu_custom_call.1} parent=1 // pred_check_branch
      %74 = sbr.rel (0) target = $region49
    $region48: #{tpu_custom_call.1} parent=1 // pred_region
      %75 = dma.done [#allocation6], 1024
    $region49: #{tpu_custom_call.1} parent=1 // pred_fallthru
      _
    %v77 = vld [vmem:[%s0] sm:$0xff]
    %v78 = vld [vmem:[#allocation2] sm:$0xf]
    %v79 = vld [vmem:[#allocation2 + $0x4] sm:$0xf]
    %v80 = vld [vmem:[#allocation2 + $0x8] sm:$0xf]
    %v81 = vld [vmem:[#allocation2 + $0xc] sm:$0xf]
    %v82 = vld [vmem:[#allocation2 + $0x10] sm:$0xf]
    %v83 = vld [vmem:[#allocation2 + $0x14] sm:$0xf]
    %v84 = vld [vmem:[#allocation2 + $0x18] sm:$0xf]
    %v85 = vld [vmem:[#allocation2 + $0x1c] sm:$0xf]
    %v86 = vld [vmem:[#allocation2 + $0x20] sm:$0xf]
    %v87 = vld [vmem:[#allocation2 + $0x24] sm:$0xf]
    %v88 = vld [vmem:[#allocation2 + $0x28] sm:$0xf]
    %v89 = vld [vmem:[#allocation2 + $0x2c] sm:$0xf]
    %v90 = vld [vmem:[#allocation2 + $0x30] sm:$0xf]
    %v91 = vld [vmem:[#allocation2 + $0x34] sm:$0xf]
    %v92 = vld [vmem:[#allocation2 + $0x38] sm:$0xf]
    %v93 = vld [vmem:[#allocation2 + $0x3c] sm:$0xf]
    %v94 = vld [vmem:[#allocation2 + $0x40] sm:$0xf]
    %v95 = vld [vmem:[#allocation2 + $0x44] sm:$0xf]
    %v96 = vld [vmem:[#allocation2 + $0x48] sm:$0xf]
    %v97 = vld [vmem:[#allocation2 + $0x4c] sm:$0xf]
    %v98 = vld [vmem:[#allocation2 + $0x50] sm:$0xf]
    %v99 = vld [vmem:[#allocation2 + $0x54] sm:$0xf]
    %v100 = vld [vmem:[#allocation2 + $0x58] sm:$0xf]
    %v101 = vld [vmem:[#allocation2 + $0x5c] sm:$0xf]
    %v102 = vld [vmem:[#allocation2 + $0x60] sm:$0xf]
    %v103 = vld [vmem:[#allocation2 + $0x64] sm:$0xf]
    %v104 = vld [vmem:[#allocation2 + $0x68] sm:$0xf]
    %v105 = vld [vmem:[#allocation2 + $0x6c] sm:$0xf]
    %v106 = vld [vmem:[#allocation2 + $0x70] sm:$0xf]
    %v107 = vld [vmem:[#allocation2 + $0x74] sm:$0xf]
    %v108 = vld [vmem:[#allocation2 + $0x78] sm:$0xf]
    %v109 = vld [vmem:[#allocation2 + $0x7c] sm:$0xf]
    %v110 = vld [vmem:[#allocation5] sm:$0x1]
    %v112 = vlaneseq
    %v113 = vshrl.u32 %v112, 7
    %v114 = vsub.s32 0, %v113
    %v115 = vrot.slane %v110, %v114
    %v118 = vunpack.c.l.b16 %v77
    %v119 = vunpack.c.h.b16 %v77
    %v120 = vpack.c.b16 %v118, %v118
    %v121 = vpack.c.b16 %v119, %v119
    %v156 = vunpack.c.l.b16 %v78
    %v157 = vunpack.c.l.b16 %v79
    %v158 = vunpack.c.l.b16 %v80
    %v159 = vunpack.c.l.b16 %v81
    %v160 = vunpack.c.l.b16 %v82
    %v161 = vunpack.c.l.b16 %v83
    %v162 = vunpack.c.l.b16 %v84
    %v163 = vunpack.c.l.b16 %v85
    %v164 = vunpack.c.l.b16 %v86
    %v165 = vunpack.c.l.b16 %v87
    %v166 = vunpack.c.l.b16 %v88
    %v167 = vunpack.c.l.b16 %v89
    %v168 = vunpack.c.l.b16 %v90
    %v169 = vunpack.c.l.b16 %v91
    %v170 = vunpack.c.l.b16 %v92
    %v171 = vunpack.c.l.b16 %v93
    %v172 = vunpack.c.l.b16 %v94
    %v173 = vunpack.c.l.b16 %v95
    %v174 = vunpack.c.l.b16 %v96
    %v175 = vunpack.c.l.b16 %v97
    %v176 = vunpack.c.l.b16 %v98
    %v177 = vunpack.c.l.b16 %v99
    %v178 = vunpack.c.l.b16 %v100
    %v179 = vunpack.c.l.b16 %v101
    %v180 = vunpack.c.l.b16 %v102
    %v181 = vunpack.c.l.b16 %v103
    %v182 = vunpack.c.l.b16 %v104
    %v183 = vunpack.c.l.b16 %v105
    %v184 = vunpack.c.l.b16 %v106
    %v185 = vunpack.c.l.b16 %v107
    %v186 = vunpack.c.l.b16 %v108
    %v187 = vunpack.c.l.b16 %v109
    %v188 = vpack.c.b16 %v157, %v156
    %v189 = vpack.c.b16 %v159, %v158
    %v190 = vpack.c.b16 %v161, %v160
    %v191 = vpack.c.b16 %v163, %v162
    %v192 = vpack.c.b16 %v165, %v164
    %v193 = vpack.c.b16 %v167, %v166
    %v194 = vpack.c.b16 %v169, %v168
    %v195 = vpack.c.b16 %v171, %v170
    %v196 = vpack.c.b16 %v173, %v172
    %v197 = vpack.c.b16 %v175, %v174
    %v198 = vpack.c.b16 %v177, %v176
    %v199 = vpack.c.b16 %v179, %v178
    %v200 = vpack.c.b16 %v181, %v180
    %v201 = vpack.c.b16 %v183, %v182
    %v202 = vpack.c.b16 %v185, %v184
    %v203 = vpack.c.b16 %v187, %v186
    %220 = vmatprep.subr.bf16.mxu0 0
    %221 = vmatpush1.bf16.msra.mxu0 %v188
    %222 = vmatprep.subr.bf16.mxu0 0
    %223 = vmatpush1.bf16.msra.mxu0 %v189
    %224 = vmatprep.subr.bf16.mxu0 0
    %225 = vmatpush1.bf16.msra.mxu0 %v190
    %226 = vmatprep.subr.bf16.mxu0 0
    %227 = vmatpush1.bf16.msra.mxu0 %v191
    %228 = vmatprep.subr.bf16.mxu0 0
    %229 = vmatpush1.bf16.msra.mxu0 %v192
    %230 = vmatprep.subr.bf16.mxu0 0
    %231 = vmatpush1.bf16.msra.mxu0 %v193
    %232 = vmatprep.subr.bf16.mxu0 0
    %233 = vmatpush1.bf16.msra.mxu0 %v194
    %234 = vmatprep.subr.bf16.mxu0 0
    %235 = vmatpush1.bf16.msra.mxu0 %v195
    %236 = vmatprep.subr.bf16.mxu0 0
    %237 = vmatpush1.bf16.msra.mxu0 %v196
    %238 = vmatprep.subr.bf16.mxu0 0
    %239 = vmatpush1.bf16.msra.mxu0 %v197
    %240 = vmatprep.subr.bf16.mxu0 0
    %241 = vmatpush1.bf16.msra.mxu0 %v198
    %242 = vmatprep.subr.bf16.mxu0 0
    %243 = vmatpush1.bf16.msra.mxu0 %v199
    %244 = vmatprep.subr.bf16.mxu0 0
    %245 = vmatpush1.bf16.msra.mxu0 %v200
    %246 = vmatprep.subr.bf16.mxu0 0
    %247 = vmatpush1.bf16.msra.mxu0 %v201
    %248 = vmatprep.subr.bf16.mxu0 0
    %249 = vmatpush1.bf16.msra.mxu0 %v202
    %250 = vmatprep.subr.bf16.mxu0 0
    %251 = vmatpush1.bf16.msra.mxu0 %v203
    %252 = vmatprep.mubr.bf16.mxu0 %v121
    %253 = vmatmul.mubr.bf16.gmra.mrb[0].mxu0 %v120
    %v254 = vpop.f32.mrb[0].mxu0
    %v255 = vadd.f32 %v115, %v254
    %v256 = vpop.f32.mrb[0].mxu0
    %v257 = vpop.f32.mrb[0].mxu0
    %v258 = vpop.f32.mrb[0].mxu0
    %259 = vdwg.mxu0
    %v260 = vrot.slane %v255, 4
    %v261 = vadd.f32 %v255, %v260
    %v262 = vrot.slane %v261, 2
    %v263 = vadd.f32 %v261, %v262
    %v264 = vrot.slane %v263, 1
    %v265 = vadd.f32 %v263, %v264
    %v266 = vmul.f32 %v255, %v255
    %v267 = vrot.slane %v266, 4
    %v268 = vadd.f32 %v266, %v267
    %v269 = vrot.slane %v268, 2
    %v270 = vadd.f32 %v268, %v269
    %v271 = vrot.slane %v270, 1
    %v272 = vadd.f32 %v270, %v271
    %v273 = vld [vmem:[%s3] sm:$0x1]
    %v274 = vld [vmem:[%s4] sm:$0x1]
    %v275 = vmul.f32 %v265, 0.125
    %v276 = vmul.f32 %v275, 8.0
    %v277 = vmul.f32 %v276, %v275
    %v278 = vsub.f32 %v272, %v277
    %v279 = vmul.f32 %v278, 0.14285715
    %v280 = vadd.f32 %v279, 1e-08
    %v281 = vrsqrt.pop %v280
    %v282 = vmul.f32 %v273, %v281
    %v283 = vmul.f32 %v282, 2.0
    %v284 = vmul.f32 %v275, %v282
    %v285 = vsub.f32 %v274, %v284
    %v286 = vmul.f32 %v285, 2.0
    %v288 = vlaneseq
    %v289 = vshrl.u32 %v288, 7
    %v290 = vsub.s32 0, %v289
    %v291 = vrot.slane %v283, %v290
    %v293 = vmul.f32 %v255, %v291
    %v295 = vlaneseq
    %v296 = vshrl.u32 %v295, 7
    %v297 = vsub.s32 0, %v296
    %v298 = vrot.slane %v286, %v297
    %v300 = vadd.f32 %v293, %v298
    %v301 = vmax.f32 %v300, 0.0
    %v302 = vld [vmem:[%s8] sm:$0xff]
    %vm303 = vcmp.lt.s32.totalorder %v302, 1073741824
    %v304 = vsel %vm303, %v301, 0.0
    %v305 = vld [vmem:[#allocation7] sm:$0xf]
    %v306 = vld [vmem:[#allocation7 + $0x4] sm:$0xf]
    %v307 = vld [vmem:[#allocation7 + $0x8] sm:$0xf]
    %v308 = vld [vmem:[#allocation7 + $0xc] sm:$0xf]
    %v309 = vld [vmem:[#allocation7 + $0x10] sm:$0xf]
    %v310 = vld [vmem:[#allocation7 + $0x14] sm:$0xf]
    %v311 = vld [vmem:[#allocation7 + $0x18] sm:$0xf]
    %v312 = vld [vmem:[#allocation7 + $0x1c] sm:$0xf]
    %v313 = vld [vmem:[#allocation7 + $0x20] sm:$0xf]
    %v314 = vld [vmem:[#allocation7 + $0x24] sm:$0xf]
    %v315 = vld [vmem:[#allocation7 + $0x28] sm:$0xf]
    %v316 = vld [vmem:[#allocation7 + $0x2c] sm:$0xf]
    %v317 = vld [vmem:[#allocation7 + $0x30] sm:$0xf]
    %v318 = vld [vmem:[#allocation7 + $0x34] sm:$0xf]
    %v319 = vld [vmem:[#allocation7 + $0x38] sm:$0xf]
    %v320 = vld [vmem:[#allocation7 + $0x3c] sm:$0xf]
    %v321 = vld [vmem:[%s6] sm:$0x1]
    %v322 = vld [vmem:[%s7] sm:$0xff]
    %v323 = vpack.c.bf16 %v304, %v304
    %v325 = vlaneseq
    %v326 = vshrl.u32 %v325, 7
    %v327 = vsub.s32 0, %v326
    %v328 = vrot.slane %v321, %v327
    %v346 = vunpack.c.l.b16 %v305
    %v347 = vunpack.c.l.b16 %v306
    %v348 = vunpack.c.l.b16 %v307
    %v349 = vunpack.c.l.b16 %v308
    %v350 = vunpack.c.l.b16 %v309
    %v351 = vunpack.c.l.b16 %v310
    %v352 = vunpack.c.l.b16 %v311
    %v353 = vunpack.c.l.b16 %v312
    %v354 = vunpack.c.l.b16 %v313
    %v355 = vunpack.c.l.b16 %v314
    %v356 = vunpack.c.l.b16 %v315
    %v357 = vunpack.c.l.b16 %v316
    %v358 = vunpack.c.l.b16 %v317
    %v359 = vunpack.c.l.b16 %v318
    %v360 = vunpack.c.l.b16 %v319
    %v361 = vunpack.c.l.b16 %v320
    %v362 = vpack.c.b16 %v347, %v346
    %v363 = vpack.c.b16 %v349, %v348
    %v364 = vpack.c.b16 %v351, %v350
    %v365 = vpack.c.b16 %v353, %v352
    %v366 = vpack.c.b16 %v355, %v354
    %v367 = vpack.c.b16 %v357, %v356
    %v368 = vpack.c.b16 %v359, %v358
    %v369 = vpack.c.b16 %v361, %v360
    %378 = vmatprep.subr.bf16.mxu0 0
    %379 = vmatpush1.bf16.msra.mxu0 %v362
    %380 = vmatprep.subr.bf16.mxu0 0
    %381 = vmatpush1.bf16.msra.mxu0 %v363
    %382 = vmatprep.subr.bf16.mxu0 0
    %383 = vmatpush1.bf16.msra.mxu0 %v364
    %384 = vmatprep.subr.bf16.mxu0 0
    %385 = vmatpush1.bf16.msra.mxu0 %v365
    %386 = vmatprep.subr.bf16.mxu0 0
    %387 = vmatpush1.bf16.msra.mxu0 %v366
    %388 = vmatprep.subr.bf16.mxu0 0
    %389 = vmatpush1.bf16.msra.mxu0 %v367
    %390 = vmatprep.subr.bf16.mxu0 0
    %391 = vmatpush1.bf16.msra.mxu0 %v368
    %392 = vmatprep.subr.bf16.mxu0 0
    %393 = vmatpush1.bf16.msra.mxu0 %v369
    %394 = vmatprep.subr.bf16.mxu0 0
    %395 = vmatpush1.bf16.msra.mxu0 0
    %396 = vmatprep.subr.bf16.mxu0 0
    %397 = vmatpush1.bf16.msra.mxu0 0
    %398 = vmatprep.subr.bf16.mxu0 0
    %399 = vmatpush1.bf16.msra.mxu0 0
    %400 = vmatprep.subr.bf16.mxu0 0
    %401 = vmatpush1.bf16.msra.mxu0 0
    %402 = vmatprep.subr.bf16.mxu0 0
    %403 = vmatpush1.bf16.msra.mxu0 0
    %404 = vmatprep.subr.bf16.mxu0 0
    %405 = vmatpush1.bf16.msra.mxu0 0
    %406 = vmatprep.subr.bf16.mxu0 0
    %407 = vmatpush1.bf16.msra.mxu0 0
    %408 = vmatprep.subr.bf16.mxu0 0
    %409 = vmatpush1.bf16.msra.mxu0 0
    %410 = vmatprep.mubr.bf16.mxu0 0
    %411 = vmatmul.mubr.bf16.gmra.mrb[0].mxu0 %v323
    %v412 = vpop.f32.mrb[0].mxu0
    %v413 = vadd.f32 %v328, %v412
    %v414 = vpop.f32.mrb[0].mxu0
    %v415 = vpop.f32.mrb[0].mxu0
    %v416 = vpop.f32.mrb[0].mxu0
    %417 = vdwg.mxu0
    %v418 = vlaneseq
    %v419 = vand.u32 %v418, 127
    %420 = vmax.xlane.f32.xlu0 %v413
    %v421 = vpop.xlane.xlu0 %420
    %vm422 = vcmp.ge.f32.partialorder %v413, %v421
    %v423 = vsel %vm422, %v419, 128
    %v424 = vand.u32 %v423, 65535
    %v425 = vshra.s32 %v423, 16
    %v426 = vcvt.s32.f32 %v424
    %v427 = vcvt.s32.f32 %v425
    %428 = vmin.xlane.f32.xlu0 %v427
    %v429 = vpop.xlane.xlu0 %428
    %vm430 = vcmp.eq.f32.partialorder %v427, %v429
    %v431 = vsel %vm430, %v426, inf
    %432 = vmin.xlane.f32.xlu0 %v431
    %v433 = vpop.xlane.xlu0 %432
    %v434 = vcvt.f32.s32 %v433
    %v435 = vcvt.f32.s32 %v429
    %v436 = vshll.u32 %v435, 16
    %v437 = vadd.s32 %v436, %v434
    %vm438 = vcmask 7168
    %439 = vst.msk [vmem:[%s9] sm:$0xff] %vm438, %v437
    %v440 = vsub.f32 %v413, %v421
    %v441 = vmul.f32 %v440, 1.442695
    %v442 = vpow.pop %v441
    %443 = vadd.xlane.f32.xlu0 %v442
    %v444 = vpop.xlane.xlu0 %443
    %v445 = vlog2.pop %v444
    %v446 = vmul.f32 %v445, 0.6931472
    %v447 = vadd.f32 %v446, %v421
    %448 = vset.pattern.permute.xlu0 0
    %449 = vperm.xlu0 %448, %v322
    %v450 = vpop.permute.xlu0 %449
    %vm451 = vcmp.eq.s32.totalorder %v419, %v450
    %v452 = vsel %vm451, %v413, 0.0
    %453 = vadd.xlane.f32.xlu0 %v452
    %v454 = vpop.xlane.xlu0 %453
    %v455 = vsub.f32 %v447, %v454
    %v456 = vrot.slane %v455, 4
    %v457 = vadd.f32 %v455, %v456
    %v458 = vrot.slane %v457, 2
    %v459 = vadd.f32 %v457, %v458
    %v460 = vrot.slane %v459, 1
    %v461 = vadd.f32 %v459, %v460
    %vm462 = vcmp.eq.s32.totalorder %v437, %v322
    %v463 = vsel %vm462, 1, 0
    %v464 = vcvt.s32.f32 %v463
    %v465 = vsel %vm438, %v464, 0.0
    %v466 = vrot.slane %v465, 4
    %v467 = vadd.f32 %v465, %v466
    %v468 = vrot.slane %v467, 2
    %v469 = vadd.f32 %v467, %v468
    %v470 = vrot.slane %v469, 1
    %v471 = vadd.f32 %v469, %v470
    %v472 = vmul.f32 %v461, 0.125
    %vm473 = vcmask 0
    %474 = vst.msk [vmem:[#allocation8] sm:$0x1] %vm473, %v472
    %v475 = vmul.f32 %v471, 0.125
    %476 = vst.msk [vmem:[#allocation9] sm:$0x1] %vm473, %v475
    // Predicated region
    $region50: #{tpu_custom_call.1} parent=1 // pred_check
      _
    $region51: #{tpu_custom_call.1} parent=1 // pred_check_branch
      %478 = sbr.rel (0) target = $region53
    $region52: #{tpu_custom_call.1} parent=1 // pred_region
      _
    $region53: #{tpu_custom_call.1} parent=1 // pred_fallthru
      _
    // Predicated region
    $region54: #{tpu_custom_call.1} parent=1 // pred_check
      _
    $region55: #{tpu_custom_call.1} parent=1 // pred_check_branch
      %480 = sbr.rel (0) target = $region57
    $region56: #{tpu_custom_call.1} parent=1 // pred_region
      %s482 = ssub.s32 16, 16
      %483 = vsyncadd [#allocation4], %s482
      %s485 = sshll.u32 [#allocation8], 4
      %s486 = int_to_ptr.vmem [resolvable:$true] %s485
      %488 = dma.vmem_to_hbm [thread:$0]  %s486, 16, %s10, [#allocation4]
    $region57: #{tpu_custom_call.1} parent=1 // pred_fallthru
      _
    // Predicated region
    $region58: #{tpu_custom_call.1} parent=1 // pred_check
      _
    $region59: #{tpu_custom_call.1} parent=1 // pred_check_branch
      %490 = sbr.rel (0) target = $region61
    $region60: #{tpu_custom_call.1} parent=1 // pred_region
      %s492 = ssub.s32 16, 16
      %493 = vsyncadd [#allocation10], %s492
      %s495 = sshll.u32 [#allocation9], 4
      %s496 = int_to_ptr.vmem [resolvable:$true] %s495
      %498 = dma.vmem_to_hbm [thread:$0]  %s496, 16, %s11, [#allocation10]
    $region61: #{tpu_custom_call.1} parent=1 // pred_fallthru
      _
    // Predicated region
    $region62: #{tpu_custom_call.1} parent=1 // pred_check
      _
    $region63: #{tpu_custom_call.1} parent=1 // pred_check_branch
      %500 = sbr.rel (0) target = $region65
    $region64: #{tpu_custom_call.1} parent=1 // pred_region
      _
    $region65: #{tpu_custom_call.1} parent=1 // pred_fallthru
      _
    // Predicated region
    $region66: #{tpu_custom_call.1} parent=1 // pred_check
      _
    $region67: #{tpu_custom_call.1} parent=1 // pred_check_branch
      %502 = sbr.rel (0) target = $region69
    $region68: #{tpu_custom_call.1} parent=1 // pred_region
      %503 = dma.done [#allocation4], 16
    $region69: #{tpu_custom_call.1} parent=1 // pred_fallthru
      _
    // Predicated region
    $region70: #{tpu_custom_call.1} parent=1 // pred_check
      _
    $region71: #{tpu_custom_call.1} parent=1 // pred_check_branch
      %505 = sbr.rel (0) target = $region73
    $region72: #{tpu_custom_call.1} parent=1 // pred_region
      %506 = dma.done [#allocation10], 16
    $region73: #{tpu_custom_call.1} parent=1 // pred_fallthru
      _
    %507 = vsyncpa [#allocation3], 1
    %508 = vsyncpa [#allocation6], 1
    %509 = vsyncpa [#allocation4], 1
    %510 = vsyncpa [#allocation10], 1

</llo_original>
